<compile_context>
chip_gen: v7x
topology: tpu7x:2x2x1
jax: 0.10.0
libtpu: 0.0.40
codegen_flags: <defaults>
</compile_context>

<pallas_src>
import numpy as np
import jax
import jax.numpy as jnp
from jax import lax
from jax.experimental import pallas as pl
from jax.experimental.pallas import tpu as pltpu


# ---------------------------------------------------------------------------
# Phase 1: PFN layer   h = relu([points, xyz - centers, 1] @ [W; b])
# Bias folded into the MXU matmul via the constant 1-channel -> no (N, H)
# VPU bias add.
# ---------------------------------------------------------------------------
def _pfn_kernel(feat_ref, w_ref, h_ref):
    h = jnp.dot(feat_ref[...], w_ref[...], preferred_element_type=jnp.float32)
    h_ref[...] = jnp.maximum(h, 0.0)


# ---------------------------------------------------------------------------
# Phase 2: dynamic scatter-max over voxels.
# grid = (voxel tiles [parallel], point tiles [arbitrary, last]).  The output
# block (TM, H) stays resident across the point axis and acts as a running-max
# accumulator (init -inf at n == 0 -> correct for any activation, not just
# post-ReLU non-negativity).
#
# TODO(synk): upgrade the dense per-tile one-hot max to a sort-based segmented
# max with scalar-prefetched per-tile point offsets (O(N*H) VPU work instead
# of O(Mp*N*H)) for large point clouds.
# ---------------------------------------------------------------------------
def _scatter_max_kernel(seg_ref, h_ref, o_ref):
    i = pl.program_id(0)

    @pl.when(pl.program_id(1) == 0)
    def _():
        o_ref[...] = jnp.full(o_ref.shape, -jnp.inf, dtype=o_ref.dtype)

    tm, _ = o_ref.shape
    tn = h_ref.shape[0]
    # voxel id handled by each output row of this voxel tile
    vox_ids = i * tm + lax.broadcasted_iota(jnp.int32, (tm, tn), 0)   # (TM, TN)
    mask = vox_ids == seg_ref[...]                                    # (TM, TN)
    # -inf is the max identity; padded points carry seg id -1 and never match.
    contrib = jnp.where(mask[:, :, None], h_ref[...][None, :, :], -jnp.inf)
    o_ref[...] = jnp.maximum(o_ref[...], jnp.max(contrib, axis=1))


def segment_voxel_encoder_forward(points, in_coors, centers, w, b,
                                  *, tile_m=64, tile_n=128,
                                  vmem_limit_bytes=32 * 1024 * 1024):
    """Mirror of segment_voxel_encoder.forward(points, in_coors, centers)."""
    pts = jnp.asarray(points, jnp.float32)
    ctr = jnp.asarray(centers, jnp.float32)
    coors = jnp.asarray(in_coors, jnp.int32)
    w = jnp.asarray(w, jnp.float32)
    b = jnp.asarray(b, jnp.float32).reshape(1, -1)
    N = pts.shape[0]
    H = w.shape[1]

    # ---- voxel dedup on device (static-size unique; no host array transfer) ----
    # torch: coors = in_coors.long(); unique voxels + inverse (point -> voxel) map.
    uniq, inv = jnp.unique(coors, axis=0, return_inverse=True,
                           size=N, fill_value=-1)
    inv = inv.reshape(-1).astype(jnp.int32)
    # Single scalar device->host sync: the data-dependent voxel count M
    # (unavoidable to produce exact-M outputs like the torch module).
    M = int(jnp.max(inv)) + 1

    npad = -(-N // tile_n) * tile_n
    mpad = -(-M // tile_m) * tile_m

    # ---- feature decoration + bias folding ----
    ones = jnp.ones((N, 1), jnp.float32)
    feat = jnp.concatenate([pts, pts[:, :3] - ctr, ones], axis=1)      # (N, Dp)
    dp = feat.shape[1]                                                 # 8
    w_aug = jnp.concatenate([w, b], axis=0)                            # (Dp, H)

    feat_p = jnp.pad(feat, ((0, npad - N), (0, 0)))                    # pad rows -> 0
    seg_p = jnp.pad(inv, (0, npad - N), constant_values=-1)            # pad -> no voxel
    seg_p = seg_p.reshape(1, npad)

    cparams_1 = pltpu.CompilerParams(
        dimension_semantics=("parallel",),
        vmem_limit_bytes=vmem_limit_bytes)
    cparams_2 = pltpu.CompilerParams(
        dimension_semantics=("parallel", "arbitrary"),
        vmem_limit_bytes=vmem_limit_bytes)

    # ---- phase 1: per-point MLP on the MXU, computed once, streamed over N ----
    h = pl.pallas_call(
        _pfn_kernel,
        out_shape=jax.ShapeDtypeStruct((npad, H), jnp.float32),
        grid_spec=pltpu.PrefetchScalarGridSpec(
            num_scalar_prefetch=0,
            grid=(npad // tile_n,),
            in_specs=[pl.BlockSpec((tile_n, dp), lambda n: (n, 0)),
                      pl.BlockSpec((dp, H), lambda n: (0, 0))],
            out_specs=pl.BlockSpec((tile_n, H), lambda n: (n, 0))),
        compiler_params=cparams_1,
    )(feat_p, w_aug)

    # ---- phase 2: tiled scatter-max with output-resident accumulator ----
    vfeat = pl.pallas_call(
        _scatter_max_kernel,
        out_shape=jax.ShapeDtypeStruct((mpad, H), jnp.float32),
        grid_spec=pltpu.PrefetchScalarGridSpec(
            num_scalar_prefetch=0,
            grid=(mpad // tile_m, npad // tile_n),
            in_specs=[pl.BlockSpec((1, tile_n), lambda i, n: (0, n)),
                      pl.BlockSpec((tile_n, H), lambda i, n: (n, 0))],
            out_specs=pl.BlockSpec((tile_m, H), lambda i, n: (i, 0))),
        compiler_params=cparams_2,
    )(seg_p, h)

    voxel_features = vfeat[:M]              # (M, H)
    voxel_coors = uniq[:M]                  # (M, 4) sorted like np.unique
    voxel2point_inds = inv                  # (N,)
    return voxel_features, voxel_coors, voxel2point_inds


if __name__ == "__main__":
    key = jax.random.PRNGKey(0)
    k_xyz, k_int, k_w, k_b = jax.random.split(key, 4)

    # Small synthetic point cloud: 200 points, 4 raw channels, 2 batches,
    # 8x8x8 voxel grid per batch, hidden size 32.
    N, H, GRID = 200, 32, 8
    C_DEC = 7                                                  # 4 raw + 3 (xyz-center)

    xyz = jax.random.uniform(k_xyz, (N, 3), jnp.float32, 0.0, float(GRID))
    intensity = jax.random.uniform(k_int, (N, 1), jnp.float32)
    points = jnp.concatenate([xyz, intensity], axis=1)         # (N, 4)

    batch_idx = jnp.concatenate(
        [jnp.zeros(N // 2, jnp.int32), jnp.ones(N - N // 2, jnp.int32)])
    vox_xyz = jnp.floor(xyz).astype(jnp.int32)                 # (N, 3) x,y,z
    # mmdet3d coordinate convention: [batch, z, y, x]
    in_coors = jnp.stack(
        [batch_idx, vox_xyz[:, 2], vox_xyz[:, 1], vox_xyz[:, 0]], axis=1)
    centers = vox_xyz.astype(jnp.float32) + 0.5                # per-point voxel centers

    # Deterministic synthetic PFN parameters: Linear(7 -> 32).
    w = jax.random.normal(k_w, (C_DEC, H), jnp.float32) * 0.1
    b = jax.random.normal(k_b, (1, H), jnp.float32) * 0.01

    vf, vc, inv = segment_voxel_encoder_forward(points, in_coors, centers, w, b)
    jax.block_until_ready((vf, vc, inv))

    # ---- pure-numpy reference check ----
    pts_np = np.asarray(points)
    ctr_np = np.asarray(centers)
    feat_np = np.concatenate([pts_np, pts_np[:, :3] - ctr_np], axis=1)
    h_np = np.maximum(feat_np @ np.asarray(w) + np.asarray(b), 0.0)
    coors_np = np.asarray(in_coors).astype(np.int64)
    vc_ref, inv_ref = np.unique(coors_np, axis=0, return_inverse=True)
    inv_ref = inv_ref.reshape(-1)
    vf_ref = np.full((vc_ref.shape[0], H), -np.inf, np.float32)
    for idx in range(N):
        vf_ref[inv_ref[idx]] = np.maximum(vf_ref[inv_ref[idx]], h_np[idx])

    assert np.asarray(vf).shape == vf_ref.shape
    assert np.allclose(np.asarray(vf), vf_ref, atol=1e-5, rtol=1e-5)
    assert np.array_equal(np.asarray(vc), vc_ref.astype(np.int32))
    assert np.array_equal(np.asarray(inv), inv_ref.astype(np.int32))
    print("KERNEL_OK")
</pallas_src>

<mosaic_0001>
module attributes {stable_mosaic.version = 11 : i64} {
  func.func @_pfn_kernel(%arg0: i32, %arg1: memref<128x8xf32, #tpu.memory_space<vmem>>, %arg2: memref<8x32xf32, #tpu.memory_space<vmem>>, %arg3: memref<128x32xf32, #tpu.memory_space<vmem>>) attributes {dimension_semantics = [#tpu.dimension_semantics<parallel>], iteration_bounds = array<i64: 2>, scalar_prefetch = 0 : i64, scratch_operands = 0 : i64, tpu.core_type = #tpu.core_type<tc>, window_params = [{transform_indices = @transform_0, window_bounds = array<i64: 128, 8>}, {pipeline_mode = #tpu.pipeline_mode<synchronous>, transform_indices = @transform_1, window_bounds = array<i64: 8, 32>}, {transform_indices = @transform_2, window_bounds = array<i64: 128, 32>}]} {
    %c0 = arith.constant 0 : index
    %c0_0 = arith.constant 0 : index
    %0 = vector.load %arg1[%c0, %c0_0] : memref<128x8xf32, #tpu.memory_space<vmem>>, vector<128x8xf32>
    %c0_1 = arith.constant 0 : index
    %c0_2 = arith.constant 0 : index
    %1 = vector.load %arg2[%c0_1, %c0_2] : memref<8x32xf32, #tpu.memory_space<vmem>>, vector<8x32xf32>
    %cst = arith.constant dense<0.000000e+00> : vector<128x32xf32>
    %2 = tpu.matmul %0, %1, %cst {dimension_numbers = #tpu.dot_dimension_numbers<[1], [0], [0], [1], [0, 0, 1, 1], [], []>} : vector<128x8xf32>, vector<8x32xf32>, vector<128x32xf32> -> vector<128x32xf32>
    %cst_3 = arith.constant 0.000000e+00 : f32
    %3 = vector.broadcast %cst_3 : f32 to vector<128x32xf32>
    %4 = arith.maximumf %2, %3 : vector<128x32xf32>
    %c0_4 = arith.constant 0 : index
    %c0_5 = arith.constant 0 : index
    %5 = vector.load %arg3[%c0_4, %c0_5] : memref<128x32xf32, #tpu.memory_space<vmem>>, vector<128x32xf32>
    tpu.vector_store %arg3[%c0_4, %c0_5], %4 {strides = array<i32>} : memref<128x32xf32, #tpu.memory_space<vmem>>, vector<128x32xf32>,
    return
  }
  func.func @transform_0(%arg0: i32) -> (i32, i32) {
    %c0_i32 = arith.constant 0 : i32
    %c0_i32_0 = arith.constant 0 : i32
    return %arg0, %c0_i32 : i32, i32
  }
  func.func @transform_1(%arg0: i32) -> (i32, i32) {
    %c0_i32 = arith.constant 0 : i32
    %c0_i32_0 = arith.constant 0 : i32
    %c0_i32_1 = arith.constant 0 : i32
    return %c0_i32, %c0_i32_0 : i32, i32
  }
  func.func @transform_2(%arg0: i32) -> (i32, i32) {
    %c0_i32 = arith.constant 0 : i32
    %c0_i32_0 = arith.constant 0 : i32
    return %arg0, %c0_i32 : i32, i32
  }
}

</mosaic_0001>

<llo_original>
// kernel: tpu_custom_call.1
$region0: #{tpu_custom_call.1}
  #allocation0 [shape = 'u32[]', space=smem, size = 0x4, offset = 0x4, fixed_abs, tag = 'smem constant byte address 0x4 - core index']
  #allocation1 [shape = 'u32[144,128]{1,0:T(1,128)}', space=vmem, size = 0x12000, scoped, tag = 'internal scratch']
  %s0 = inlined_call_operand.vmem [shape: f32[256,8], index: 0, kind: input, shape index: {}]
  %s1 = inlined_call_operand.vmem [shape: f32[8,32], index: 1, kind: input, shape index: {}]
  %s2 = inlined_call_operand.vmem [shape: f32[256,32], index: 2, kind: output, shape index: {}]
  %s3 = sld [smem:[#allocation0]]
  $region41: #{tpu_custom_call.1} parent=0
    _
  %s5 = ssub.s32 1, %s3
  %s6 = scalar_select 0, %s5, %s3
  loop: start=0, step=1, limit=4
  $region2: #{tpu_custom_call.1} parent=0 // loop_pre_header
    _
  $region3: #{tpu_custom_call.1} parent=0 // loop_header
    %s8 = sphi 0, %s12
    %p9 = scmp.ge.s32.totalorder %s8, 4
    %s18 = sphi 0, %s20
    %s21 = sphi 0, %s18
    %s22 = sphi 0, %s21
    %s38 = sphi 0, %s22
    %s42 = sphi 0, %s42
    %s44 = sphi 0, %s42
    %s45 = sphi 0, %s44
    %s59 = sphi 0, %s45
    %s65 = sphi 0, %s67
    %s68 = sphi 0, %s65
    %s69 = sphi 0, %s68
    %s85 = sphi 0, %s69
  $region4: #{tpu_custom_call.1} parent=0 // loop_header_branch
    %11 = sbr.rel (%p9) target = $region8
  $region5: #{tpu_custom_call.1} parent=0 // loop_body
    %s13 = ssub.s32 %s8, 1
    %s14 = ssub.s32 %s8, 2
    %s15 = sadd.s32 %s8, 1
    %s16 = ssub.s32 %s8, %s15
    %p17 = scmp.eq.s32.totalorder %s16, 0
    %s19 = sadd.s32 %s18, 1
    %s20 = scalar_select %p17, %s18, %s19
    %p23 = pneg %p17
    %p24 = scmp.eq.s32.totalorder %s8, 1
    %p25 = por %p23, %p24
    %p26 = scmp.ne.s32.totalorder %s18, %s21
    %p27 = scmp.eq.s32.totalorder %s8, 0
    %p28 = por %p26, %p27
    %p29 = scmp.ne.s32.totalorder %s18, %s21
    %p30 = scmp.eq.s32.totalorder %s13, 1
    %p31 = por %p29, %p30
    %p32 = scmp.ne.s32.totalorder %s21, %s22
    %p33 = scmp.eq.s32.totalorder %s13, 0
    %p34 = por %p32, %p33
    %p35 = scmp.ne.s32.totalorder %s21, %s22
    %p36 = scmp.eq.s32.totalorder %s14, 1
    %p37 = por %p35, %p36
    %p39 = scmp.ne.s32.totalorder %s22, %s38
    %p40 = scmp.eq.s32.totalorder %s14, 0
    %p41 = por %p39, %p40
    %s43 = sadd.s32 %s42, 1
    %p46 = scmp.eq.s32.totalorder %s8, 1
    %p47 = scmp.ne.s32.totalorder %s42, %s44
    %p48 = scmp.eq.s32.totalorder %s8, 0
    %p49 = por %p47, %p48
    %p50 = scmp.ne.s32.totalorder %s42, %s44
    %p51 = scmp.eq.s32.totalorder %s13, 1
    %p52 = por %p50, %p51
    %p53 = scmp.ne.s32.totalorder %s44, %s45
    %p54 = scmp.eq.s32.totalorder %s13, 0
    %p55 = por %p53, %p54
    %p56 = scmp.ne.s32.totalorder %s44, %s45
    %p57 = scmp.eq.s32.totalorder %s14, 1
    %p58 = por %p56, %p57
    %p60 = scmp.ne.s32.totalorder %s45, %s59
    %p61 = scmp.eq.s32.totalorder %s14, 0
    %p62 = por %p60, %p61
    %s63 = ssub.s32 %s8, %s15
    %p64 = scmp.eq.s32.totalorder %s63, 0
    %s66 = sadd.s32 %s65, 1
    %s67 = scalar_select %p64, %s65, %s66
    %p70 = pneg %p64
    %p71 = scmp.eq.s32.totalorder %s8, 1
    %p72 = por %p70, %p71
    %p73 = scmp.ne.s32.totalorder %s65, %s68
    %p74 = scmp.eq.s32.totalorder %s8, 0
    %p75 = por %p73, %p74
    %p76 = scmp.ne.s32.totalorder %s65, %s68
    %p77 = scmp.eq.s32.totalorder %s13, 1
    %p78 = por %p76, %p77
    %p79 = scmp.ne.s32.totalorder %s68, %s69
    %p80 = scmp.eq.s32.totalorder %s13, 0
    %p81 = por %p79, %p80
    %p82 = scmp.ne.s32.totalorder %s68, %s69
    %p83 = scmp.eq.s32.totalorder %s14, 1
    %p84 = por %p82, %p83
    %p86 = scmp.ne.s32.totalorder %s69, %s85
    %p87 = scmp.eq.s32.totalorder %s14, 0
    %p88 = por %p86, %p87
    %p89 = scmp.le.s32.totalorder 1, %s8
    %p90 = scmp.lt.s32.totalorder %s8, 3
    %p91 = pnand %p89, %p90
    %p92 = pneg %p91
    // Predicated region
    $region9: #{tpu_custom_call.1} parent=5 // pred_check
      _
    $region10: #{tpu_custom_call.1} parent=5 // pred_check_branch
      %94 = sbr.rel (%p91) target = $region12
    $region11: #{tpu_custom_call.1} parent=5 // pred_region
      %s95 = ssub.s32 %s8, 1
      // Predicated region
      $region13: #{tpu_custom_call.1} parent=11 // pred_check
        %p96 = pneg %p55
      $region14: #{tpu_custom_call.1} parent=11 // pred_check_branch
        %98 = sbr.rel (%p96) target = $region16
      $region15: #{tpu_custom_call.1} parent=11 // pred_region
        _
      $region16: #{tpu_custom_call.1} parent=11 // pred_fallthru
        _
    $region12: #{tpu_custom_call.1} parent=5 // pred_fallthru
      _
    %p99 = scmp.lt.s32.totalorder %s8, 2
    // Predicated region
    $region17: #{tpu_custom_call.1} parent=5 // pred_check
      %p100 = pneg %p99
    $region18: #{tpu_custom_call.1} parent=5 // pred_check_branch
      %102 = sbr.rel (%p100) target = $region20
    $region19: #{tpu_custom_call.1} parent=5 // pred_region
      // Predicated region
      $region21: #{tpu_custom_call.1} parent=19 // pred_check
        %p103 = pneg %p28
      $region22: #{tpu_custom_call.1} parent=19 // pred_check_branch
        %105 = sbr.rel (%p103) target = $region24
      $region23: #{tpu_custom_call.1} parent=19 // pred_region
        %s106 = smul.u32 16, %s8
        %p107 = scmp.lt.s32.totalorder %s106, 31
        %s108 = scalar_select %p107, %s106, 31
        %s109 = smul.addr %s108, 8
        %s110 = scalar_lea.vmem %s0, %s109
        %s111 = smul.u32 16, %s8
      $region24: #{tpu_custom_call.1} parent=19 // pred_fallthru
        _
    $region20: #{tpu_custom_call.1} parent=5 // pred_fallthru
      _
    %p112 = scmp.le.s32.totalorder 1, %s8
    %p113 = scmp.lt.s32.totalorder %s8, 3
    %p114 = pnand %p112, %p113
    %p115 = pneg %p114
    // Predicated region
    $region25: #{tpu_custom_call.1} parent=5 // pred_check
      _
    $region26: #{tpu_custom_call.1} parent=5 // pred_check_branch
      %117 = sbr.rel (%p114) target = $region28
    $region27: #{tpu_custom_call.1} parent=5 // pred_region
      %s118 = ssub.s32 %s8, 1
      %s119 = smul.u32 16, %s13
      %p120 = scmp.lt.s32.totalorder %s119, 31
      %s121 = scalar_select %p120, %s119, 31
      %s122 = smul.addr %s121, 8
      %s123 = scalar_lea.vmem %s0, %s122
      %p124 = pneg %p34
      %p125 = pneg %p31
      %p126 = pneg %p55
      %p127 = pneg %p52
      %p128 = pneg %p81
      %p129 = pneg %p78
      %s130 = smul.u32 16, %s13
      %p131 = scmp.lt.s32.totalorder %s130, 31
      %s132 = scalar_select %p131, %s130, 31
      %s133 = smul.addr %s132, 8
      %s134 = scalar_lea.vmem %s2, %s133
      %s135 = smul.u32 16, %s13
      %p136 = scmp.lt.s32.totalorder %s135, 31
      %s137 = scalar_select %p136, %s135, 31
      %s138 = smul.addr %s137, 8
      %s139 = scalar_lea.vmem %s0, %s138
      %s140 = smul.u32 16, %s13
      %s141 = smul.u32 16, %s13
      %p142 = scmp.lt.s32.totalorder %s141, 31
      %s143 = scalar_select %p142, %s141, 31
      %s144 = smul.addr %s143, 8
      %s145 = scalar_lea.vmem %s2, %s144
      %s146 = smul.u32 16, %s13
      %v147 = vld [vmem:[%s139] sm:$0xff]
      %v148 = vld [vmem:[%s139 + $0x8] sm:$0xff]
      %v149 = vld [vmem:[%s139 + $0x10] sm:$0xff]
      %v150 = vld [vmem:[%s139 + $0x18] sm:$0xff]
      %v151 = vld [vmem:[%s139 + $0x20] sm:$0xff]
      %v152 = vld [vmem:[%s139 + $0x28] sm:$0xff]
      %v153 = vld [vmem:[%s139 + $0x30] sm:$0xff]
      %v154 = vld [vmem:[%s139 + $0x38] sm:$0xff]
      %v155 = vld [vmem:[%s139 + $0x40] sm:$0xff]
      %v156 = vld [vmem:[%s139 + $0x48] sm:$0xff]
      %v157 = vld [vmem:[%s139 + $0x50] sm:$0xff]
      %v158 = vld [vmem:[%s139 + $0x58] sm:$0xff]
      %v159 = vld [vmem:[%s139 + $0x60] sm:$0xff]
      %v160 = vld [vmem:[%s139 + $0x68] sm:$0xff]
      %v161 = vld [vmem:[%s139 + $0x70] sm:$0xff]
      %v162 = vld [vmem:[%s139 + $0x78] sm:$0xff]
      %v163 = vld [vmem:[%s1] sm:$0xff]
      %vm164 = vcmask 64512
      %v166 = vsel %vm164, %v147, 0
      %v169 = vsel %vm164, %v148, 0
      %v172 = vsel %vm164, %v149, 0
      %v175 = vsel %vm164, %v150, 0
      %v178 = vsel %vm164, %v151, 0
      %v181 = vsel %vm164, %v152, 0
      %v184 = vsel %vm164, %v153, 0
      %v187 = vsel %vm164, %v154, 0
      %v190 = vsel %vm164, %v155, 0
      %v193 = vsel %vm164, %v156, 0
      %v196 = vsel %vm164, %v157, 0
      %v199 = vsel %vm164, %v158, 0
      %v202 = vsel %vm164, %v159, 0
      %v205 = vsel %vm164, %v160, 0
      %v208 = vsel %vm164, %v161, 0
      %v211 = vsel %vm164, %v162, 0
      %213 = vmatprep.subr.mxu0 0.0
      %214 = vmatpush1.msra.mxu0 %v163
      %215 = vmatprep.subr.mxu0 0.0
      %216 = vmatpush1.msra.mxu0 0.0
      %217 = vmatprep.subr.mxu0 0.0
      %218 = vmatpush1.msra.mxu0 0.0
      %219 = vmatprep.subr.mxu0 0.0
      %220 = vmatpush1.msra.mxu0 0.0
      %221 = vmatprep.subr.mxu0 0.0
      %222 = vmatpush1.msra.mxu0 0.0
      %223 = vmatprep.subr.mxu0 0.0
      %224 = vmatpush1.msra.mxu0 0.0
      %225 = vmatprep.subr.mxu0 0.0
      %226 = vmatpush1.msra.mxu0 0.0
      %227 = vmatprep.subr.mxu0 0.0
      %228 = vmatpush1.msra.mxu0 0.0
      %229 = vmatprep.subr.mxu0 0.0
      %230 = vmatpush1.msra.mxu0 0.0
      %231 = vmatprep.subr.mxu0 0.0
      %232 = vmatpush1.msra.mxu0 0.0
      %233 = vmatprep.subr.mxu0 0.0
      %234 = vmatpush1.msra.mxu0 0.0
      %235 = vmatprep.subr.mxu0 0.0
      %236 = vmatpush1.msra.mxu0 0.0
      %237 = vmatprep.subr.mxu0 0.0
      %238 = vmatpush1.msra.mxu0 0.0
      %239 = vmatprep.subr.mxu0 0.0
      %240 = vmatpush1.msra.mxu0 0.0
      %241 = vmatprep.subr.mxu0 0.0
      %242 = vmatpush1.msra.mxu0 0.0
      %243 = vmatprep.subr.mxu0 0.0
      %244 = vmatpush1.msra.mxu0 0.0
      %245 = vmatprep.subr.mxu0 0.0
      %246 = vmatpush1.msra.mxu0 0.0
      %247 = vmatprep.subr.mxu0 0.0
      %248 = vmatpush1.msra.mxu0 0.0
      %249 = vmatprep.subr.mxu0 0.0
      %250 = vmatpush1.msra.mxu0 0.0
      %251 = vmatprep.subr.mxu0 0.0
      %252 = vmatpush1.msra.mxu0 0.0
      %253 = vmatprep.subr.mxu0 0.0
      %254 = vmatpush1.msra.mxu0 0.0
      %255 = vmatprep.subr.mxu0 0.0
      %256 = vmatpush1.msra.mxu0 0.0
      %257 = vmatprep.subr.mxu0 0.0
      %258 = vmatpush1.msra.mxu0 0.0
      %259 = vmatprep.subr.mxu0 0.0
      %260 = vmatpush1.msra.mxu0 0.0
      %261 = vmatprep.subr.mxu0 0.0
      %262 = vmatpush1.msra.mxu0 0.0
      %263 = vmatprep.subr.mxu0 0.0
      %264 = vmatpush1.msra.mxu0 0.0
      %265 = vmatprep.subr.mxu0 0.0
      %266 = vmatpush1.msra.mxu0 0.0
      %267 = vmatprep.subr.mxu0 0.0
      %268 = vmatpush1.msra.mxu0 0.0
      %269 = vmatprep.subr.mxu0 0.0
      %270 = vmatpush1.msra.mxu0 0.0
      %271 = vmatprep.subr.mxu0 0.0
      %272 = vmatpush1.msra.mxu0 0.0
      %273 = vmatprep.subr.mxu0 0.0
      %274 = vmatpush1.msra.mxu0 0.0
      %275 = vmatprep.subr.mxu0 0.0
      %276 = vmatpush1.msra.mxu0 0.0
      %277 = vmatprep.mubr.f32.mxu0 0.0
      %278 = vmatmul.mubr.f32.gmra.mrb[0].mxu0 %v166
      %v279 = vpop.f32.mrb[0].mxu0
      %v280 = vadd.f32 0.0, %v279
      %v281 = vpop.f32.mrb[0].mxu0
      %282 = vmatprep.mubr.f32.mxu0 0.0
      %283 = vmatmul.mubr.f32.gmra.mrb[0].mxu0 %v169
      %v284 = vpop.f32.mrb[0].mxu0
      %v285 = vadd.f32 0.0, %v284
      %v286 = vpop.f32.mrb[0].mxu0
      %287 = vmatprep.mubr.f32.mxu0 0.0
      %288 = vmatmul.mubr.f32.gmra.mrb[0].mxu0 %v172
      %v289 = vpop.f32.mrb[0].mxu0
      %v290 = vadd.f32 0.0, %v289
      %v291 = vpop.f32.mrb[0].mxu0
      %292 = vmatprep.mubr.f32.mxu0 0.0
      %293 = vmatmul.mubr.f32.gmra.mrb[0].mxu0 %v175
      %v294 = vpop.f32.mrb[0].mxu0
      %v295 = vadd.f32 0.0, %v294
      %v296 = vpop.f32.mrb[0].mxu0
      %297 = vmatprep.mubr.f32.mxu0 0.0
      %298 = vmatmul.mubr.f32.gmra.mrb[0].mxu0 %v178
      %v299 = vpop.f32.mrb[0].mxu0
      %v300 = vadd.f32 0.0, %v299
      %v301 = vpop.f32.mrb[0].mxu0
      %302 = vmatprep.mubr.f32.mxu0 0.0
      %303 = vmatmul.mubr.f32.gmra.mrb[0].mxu0 %v181
      %v304 = vpop.f32.mrb[0].mxu0
      %v305 = vadd.f32 0.0, %v304
      %v306 = vpop.f32.mrb[0].mxu0
      %307 = vmatprep.mubr.f32.mxu0 0.0
      %308 = vmatmul.mubr.f32.gmra.mrb[0].mxu0 %v184
      %v309 = vpop.f32.mrb[0].mxu0
      %v310 = vadd.f32 0.0, %v309
      %v311 = vpop.f32.mrb[0].mxu0
      %312 = vmatprep.mubr.f32.mxu0 0.0
      %313 = vmatmul.mubr.f32.gmra.mrb[0].mxu0 %v187
      %v314 = vpop.f32.mrb[0].mxu0
      %v315 = vadd.f32 0.0, %v314
      %v316 = vpop.f32.mrb[0].mxu0
      %317 = vmatprep.mubr.f32.mxu0 0.0
      %318 = vmatmul.mubr.f32.gmra.mrb[0].mxu0 %v190
      %v319 = vpop.f32.mrb[0].mxu0
      %v320 = vadd.f32 0.0, %v319
      %v321 = vpop.f32.mrb[0].mxu0
      %322 = vmatprep.mubr.f32.mxu0 0.0
      %323 = vmatmul.mubr.f32.gmra.mrb[0].mxu0 %v193
      %v324 = vpop.f32.mrb[0].mxu0
      %v325 = vadd.f32 0.0, %v324
      %v326 = vpop.f32.mrb[0].mxu0
      %327 = vmatprep.mubr.f32.mxu0 0.0
      %328 = vmatmul.mubr.f32.gmra.mrb[0].mxu0 %v196
      %v329 = vpop.f32.mrb[0].mxu0
      %v330 = vadd.f32 0.0, %v329
      %v331 = vpop.f32.mrb[0].mxu0
      %332 = vmatprep.mubr.f32.mxu0 0.0
      %333 = vmatmul.mubr.f32.gmra.mrb[0].mxu0 %v199
      %v334 = vpop.f32.mrb[0].mxu0
      %v335 = vadd.f32 0.0, %v334
      %v336 = vpop.f32.mrb[0].mxu0
      %337 = vmatprep.mubr.f32.mxu0 0.0
      %338 = vmatmul.mubr.f32.gmra.mrb[0].mxu0 %v202
      %v339 = vpop.f32.mrb[0].mxu0
      %v340 = vadd.f32 0.0, %v339
      %v341 = vpop.f32.mrb[0].mxu0
      %342 = vmatprep.mubr.f32.mxu0 0.0
      %343 = vmatmul.mubr.f32.gmra.mrb[0].mxu0 %v205
      %v344 = vpop.f32.mrb[0].mxu0
      %v345 = vadd.f32 0.0, %v344
      %v346 = vpop.f32.mrb[0].mxu0
      %347 = vmatprep.mubr.f32.mxu0 0.0
      %348 = vmatmul.mubr.f32.gmra.mrb[0].mxu0 %v208
      %v349 = vpop.f32.mrb[0].mxu0
      %v350 = vadd.f32 0.0, %v349
      %v351 = vpop.f32.mrb[0].mxu0
      %352 = vmatprep.mubr.f32.mxu0 0.0
      %353 = vmatmul.mubr.f32.gmra.mrb[0].mxu0 %v211
      %v354 = vpop.f32.mrb[0].mxu0
      %v355 = vadd.f32 0.0, %v354
      %v356 = vpop.f32.mrb[0].mxu0
      %357 = vdwg.mxu0
      %v358 = vmax.f32 %v280, 0.0
      %v359 = vmax.f32 %v285, 0.0
      %v360 = vmax.f32 %v290, 0.0
      %v361 = vmax.f32 %v295, 0.0
      %v362 = vmax.f32 %v300, 0.0
      %v363 = vmax.f32 %v305, 0.0
      %v364 = vmax.f32 %v310, 0.0
      %v365 = vmax.f32 %v315, 0.0
      %v366 = vmax.f32 %v320, 0.0
      %v367 = vmax.f32 %v325, 0.0
      %v368 = vmax.f32 %v330, 0.0
      %v369 = vmax.f32 %v335, 0.0
      %v370 = vmax.f32 %v340, 0.0
      %v371 = vmax.f32 %v345, 0.0
      %v372 = vmax.f32 %v350, 0.0
      %v373 = vmax.f32 %v355, 0.0
      %vm374 = vcmask 261120
      %375 = vst.msk [vmem:[%s145] sm:$0xff] %vm374, %v358
      %376 = vst.msk [vmem:[%s145 + $0x8] sm:$0xff] %vm374, %v359
      %377 = vst.msk [vmem:[%s145 + $0x10] sm:$0xff] %vm374, %v360
      %378 = vst.msk [vmem:[%s145 + $0x18] sm:$0xff] %vm374, %v361
      %379 = vst.msk [vmem:[%s145 + $0x20] sm:$0xff] %vm374, %v362
      %380 = vst.msk [vmem:[%s145 + $0x28] sm:$0xff] %vm374, %v363
      %381 = vst.msk [vmem:[%s145 + $0x30] sm:$0xff] %vm374, %v364
      %382 = vst.msk [vmem:[%s145 + $0x38] sm:$0xff] %vm374, %v365
      %383 = vst.msk [vmem:[%s145 + $0x40] sm:$0xff] %vm374, %v366
      %384 = vst.msk [vmem:[%s145 + $0x48] sm:$0xff] %vm374, %v367
      %385 = vst.msk [vmem:[%s145 + $0x50] sm:$0xff] %vm374, %v368
      %386 = vst.msk [vmem:[%s145 + $0x58] sm:$0xff] %vm374, %v369
      %387 = vst.msk [vmem:[%s145 + $0x60] sm:$0xff] %vm374, %v370
      %388 = vst.msk [vmem:[%s145 + $0x68] sm:$0xff] %vm374, %v371
      %389 = vst.msk [vmem:[%s145 + $0x70] sm:$0xff] %vm374, %v372
      %390 = vst.msk [vmem:[%s145 + $0x78] sm:$0xff] %vm374, %v373
      %s391 = smul.u32 16, %s13
      %p392 = scmp.lt.s32.totalorder %s391, 31
      %s393 = scalar_select %p392, %s391, 31
      %s394 = smul.addr %s393, 8
      %s395 = scalar_lea.vmem %s2, %s394
      // Predicated region
      $region29: #{tpu_custom_call.1} parent=27 // pred_check
        %p396 = pneg %p78
      $region30: #{tpu_custom_call.1} parent=27 // pred_check_branch
        %398 = sbr.rel (%p396) target = $region32
      $region31: #{tpu_custom_call.1} parent=27 // pred_region
        %s399 = smul.u32 16, %s13
      $region32: #{tpu_custom_call.1} parent=27 // pred_fallthru
        _
    $region28: #{tpu_custom_call.1} parent=5 // pred_fallthru
      _
    %p400 = scmp.le.s32.totalorder 2, %s8
    // Predicated region
    $region33: #{tpu_custom_call.1} parent=5 // pred_check
      %p401 = pneg %p400
    $region34: #{tpu_custom_call.1} parent=5 // pred_check_branch
      %403 = sbr.rel (%p401) target = $region36
    $region35: #{tpu_custom_call.1} parent=5 // pred_region
      %s404 = ssub.s32 %s8, 2
      // Predicated region
      $region37: #{tpu_custom_call.1} parent=35 // pred_check
        %p405 = pneg %p84
      $region38: #{tpu_custom_call.1} parent=35 // pred_check_branch
        %407 = sbr.rel (%p405) target = $region40
      $region39: #{tpu_custom_call.1} parent=35 // pred_region
        %s408 = smul.u32 16, %s14
        %p409 = scmp.lt.s32.totalorder %s408, 31
        %s410 = scalar_select %p409, %s408, 31
        %s411 = smul.addr %s410, 8
        %s412 = scalar_lea.vmem %s2, %s411
      $region40: #{tpu_custom_call.1} parent=35 // pred_fallthru
        _
    $region36: #{tpu_custom_call.1} parent=5 // pred_fallthru
      _
  $region6: #{tpu_custom_call.1} parent=0 // loop_footer
    %s12 = sadd.s32 1, %s8
  $region7: #{tpu_custom_call.1} parent=0 // loop_footer_branch
    %7 = sbr.rel target = $region3
  $region8: #{tpu_custom_call.1} parent=0 // loop_exit
    _

</llo_original>
